<compile_context>
chip_gen: v5e
topology: v5e:2x2
jax: 0.10.0
libtpu: 0.0.40
codegen_flags: <defaults>
</compile_context>

<pallas_src>
import functools

import jax
import jax.numpy as jnp
from jax.experimental import pallas as pl
from jax.experimental.pallas import tpu as pltpu


def _oursab_kernel(x_ref, w1a_ref, w1b_ref, w2a_ref, w2b_ref, o_ref, *,
                   c1, inv_hw, hw_valid, hw_pad):
    # x_ref block: (TB, C, HWp) -- TB batch rows per grid step.
    xv = x_ref[...]                                   # (TB, C, HWp) f32

    # Adaptive avg / max pool to 1x1 == reductions over the lane (spatial) axis.
    # Padding lanes (if any) are zero, so the sum is unaffected; mask them out
    # of the max path explicitly.
    s = jnp.sum(xv, axis=-1)                          # (TB, C)
    if hw_pad == hw_valid:
        mx = jnp.max(xv, axis=-1)                     # (TB, C)
    else:
        lane = jax.lax.broadcasted_iota(jnp.int32, xv.shape, dimension=2)
        mx = jnp.max(jnp.where(lane < hw_valid, xv, -jnp.inf), axis=-1)
    avg = s * inv_hw                                  # (TB, C)

    # fc1: Linear(C -> C/r, no bias) -> ReLU -> Linear(C/r -> C, no bias)
    h1 = jnp.maximum(
        jnp.dot(avg, w1a_ref[...], preferred_element_type=jnp.float32), 0.0)
    y1 = jnp.dot(h1, w1b_ref[...], preferred_element_type=jnp.float32)

    # fc2: same structure, fed by max-pool
    h2 = jnp.maximum(
        jnp.dot(mx, w2a_ref[...], preferred_element_type=jnp.float32), 0.0)
    y2 = jnp.dot(h2, w2b_ref[...], preferred_element_type=jnp.float32)

    # y = sigmoid(c1*y1 + (1-c1)*y2); out = x*y + x == x*(y+1)
    y = jax.nn.sigmoid(c1 * y1 + (1.0 - c1) * y2)     # (TB, C)
    o_ref[...] = xv * (y + 1.0)[:, :, None]


def oursab_pallas(x, w1a, w1b, w2a, w2b, c1=0.5):
    """x: (B, C, H, W) float32. Weights stored as (in, out)."""
    B, C, H, W = x.shape
    HW = H * W
    Cr = w1a.shape[1]
    assert w1a.shape == (C, Cr) and w1b.shape == (Cr, C)
    assert w2a.shape == (C, Cr) and w2b.shape == (Cr, C)

    # Pad the lane axis to a multiple of 128 for lane-dense loads/stores.
    HWp = pl.cdiv(HW, 128) * 128
    x2 = x.reshape(B, C, HW)
    if HWp != HW:
        x2 = jnp.pad(x2, ((0, 0), (0, 0), (0, HWp - HW)))

    # Pick a batch tile so each (TB, C, HWp) block is ~<= 4 MiB (double-buffered
    # in + out comfortably under the 32 MiB scoped-VMEM limit on every gen),
    # keep >= 2 grid steps when B >= 2 (v7x megacore), and make TB divide B.
    bytes_per_batch = C * HWp * 4
    target_block_bytes = 4 * 1024 * 1024
    tb = max(1, min(B, target_block_bytes // max(bytes_per_batch, 1)))
    if B >= 2:
        tb = min(tb, (B + 1) // 2)
    while B % tb:
        tb -= 1
    grid = (B // tb,)

    kernel = functools.partial(
        _oursab_kernel,
        c1=float(c1), inv_hw=float(1.0 / HW), hw_valid=HW, hw_pad=HWp)

    out = pl.pallas_call(
        kernel,
        out_shape=jax.ShapeDtypeStruct((B, C, HWp), x.dtype),
        grid=grid,
        in_specs=[
            pl.BlockSpec((tb, C, HWp), lambda b: (b, 0, 0)),  # x, batch tile
            pl.BlockSpec((C, Cr), lambda b: (0, 0)),          # fc1 first weight
            pl.BlockSpec((Cr, C), lambda b: (0, 0)),          # fc1 second weight
            pl.BlockSpec((C, Cr), lambda b: (0, 0)),          # fc2 first weight
            pl.BlockSpec((Cr, C), lambda b: (0, 0)),          # fc2 second weight
        ],
        out_specs=pl.BlockSpec((tb, C, HWp), lambda b: (b, 0, 0)),
        compiler_params=pltpu.CompilerParams(
            dimension_semantics=("parallel",),
            vmem_limit_bytes=32 * 1024 * 1024),
    )(x2, w1a, w1b, w2a, w2b)

    if HWp != HW:
        out = out[:, :, :HW]
    return out.reshape(B, C, H, W)


def _reference(x, w1a, w1b, w2a, w2b, c1=0.5):
    avg = jnp.mean(x, axis=(2, 3))
    mx = jnp.max(x, axis=(2, 3))
    y1 = jnp.maximum(avg @ w1a, 0.0) @ w1b
    y2 = jnp.maximum(mx @ w2a, 0.0) @ w2b
    y = jax.nn.sigmoid(c1 * y1 + (1.0 - c1) * y2)
    y = y[:, :, None, None]
    return x * y + x


if __name__ == "__main__":
    # Shapes consistent with the module: ch_in must be divisible by reduction=8
    B, C, H, W = 2, 32, 16, 16
    reduction = 8
    Cr = C // reduction
    c1 = 0.5

    key = jax.random.PRNGKey(0)
    kx, k1, k2, k3, k4 = jax.random.split(key, 5)

    x = jax.random.normal(kx, (B, C, H, W), dtype=jnp.float32)
    # PyTorch nn.Linear stores (out, in) and computes x @ W.T; here we directly
    # store the (in, out) layout.
    w1a = jax.random.normal(k1, (C, Cr), dtype=jnp.float32) * 0.1
    w1b = jax.random.normal(k2, (Cr, C), dtype=jnp.float32) * 0.1
    w2a = jax.random.normal(k3, (C, Cr), dtype=jnp.float32) * 0.1
    w2b = jax.random.normal(k4, (Cr, C), dtype=jnp.float32) * 0.1

    out = oursab_pallas(x, w1a, w1b, w2a, w2b, c1=c1)
    out = jax.block_until_ready(out)

    ref = _reference(x, w1a, w1b, w2a, w2b, c1=c1)
    assert out.shape == (B, C, H, W)
    assert jnp.allclose(out, ref, atol=1e-5, rtol=1e-5), "mismatch vs reference"

    print("KERNEL_OK")
</pallas_src>

<mosaic_0001>
module attributes {stable_mosaic.version = 11 : i64} {
  func.func @_oursab_kernel(%arg0: i32, %arg1: memref<1x32x256xf32, #tpu.memory_space<vmem>>, %arg2: memref<32x4xf32, #tpu.memory_space<vmem>>, %arg3: memref<4x32xf32, #tpu.memory_space<vmem>>, %arg4: memref<32x4xf32, #tpu.memory_space<vmem>>, %arg5: memref<4x32xf32, #tpu.memory_space<vmem>>, %arg6: memref<1x32x256xf32, #tpu.memory_space<vmem>>) attributes {dimension_semantics = [#tpu.dimension_semantics<parallel>], iteration_bounds = array<i64: 2>, scalar_prefetch = 0 : i64, scratch_operands = 0 : i64, tpu.core_type = #tpu.core_type<tc>, window_params = [{transform_indices = @transform_0, window_bounds = array<i64: 1, 32, 256>}, {pipeline_mode = #tpu.pipeline_mode<synchronous>, transform_indices = @transform_1, window_bounds = array<i64: 32, 4>}, {pipeline_mode = #tpu.pipeline_mode<synchronous>, transform_indices = @transform_2, window_bounds = array<i64: 4, 32>}, {pipeline_mode = #tpu.pipeline_mode<synchronous>, transform_indices = @transform_3, window_bounds = array<i64: 32, 4>}, {pipeline_mode = #tpu.pipeline_mode<synchronous>, transform_indices = @transform_4, window_bounds = array<i64: 4, 32>}, {transform_indices = @transform_5, window_bounds = array<i64: 1, 32, 256>}]} {
    %c0 = arith.constant 0 : index
    %c0_0 = arith.constant 0 : index
    %c0_1 = arith.constant 0 : index
    %0 = vector.load %arg1[%c0, %c0_0, %c0_1] : memref<1x32x256xf32, #tpu.memory_space<vmem>>, vector<1x32x256xf32>
    %cst = arith.constant dense<0.000000e+00> : vector<1x32xf32>
    %1 = vector.multi_reduction <add>, %0, %cst [2] : vector<1x32x256xf32> to vector<1x32xf32>
    %cst_2 = arith.constant dense<0xFF800000> : vector<1x32xf32>
    %2 = vector.multi_reduction <maximumf>, %0, %cst_2 [2] : vector<1x32x256xf32> to vector<1x32xf32>
    %cst_3 = arith.constant 3.906250e-03 : f32
    %3 = vector.broadcast %cst_3 : f32 to vector<1x32xf32>
    %4 = arith.mulf %1, %3 : vector<1x32xf32>
    %c0_4 = arith.constant 0 : index
    %c0_5 = arith.constant 0 : index
    %5 = vector.load %arg2[%c0_4, %c0_5] : memref<32x4xf32, #tpu.memory_space<vmem>>, vector<32x4xf32>
    %cst_6 = arith.constant dense<0.000000e+00> : vector<1x4xf32>
    %6 = tpu.matmul %4, %5, %cst_6 {dimension_numbers = #tpu.dot_dimension_numbers<[1], [0], [0], [1], [0, 0, 1, 1], [], []>} : vector<1x32xf32>, vector<32x4xf32>, vector<1x4xf32> -> vector<1x4xf32>
    %cst_7 = arith.constant 0.000000e+00 : f32
    %7 = vector.broadcast %cst_7 : f32 to vector<1x4xf32>
    %8 = arith.maximumf %6, %7 : vector<1x4xf32>
    %c0_8 = arith.constant 0 : index
    %c0_9 = arith.constant 0 : index
    %9 = vector.load %arg3[%c0_8, %c0_9] : memref<4x32xf32, #tpu.memory_space<vmem>>, vector<4x32xf32>
    %cst_10 = arith.constant dense<0.000000e+00> : vector<1x32xf32>
    %10 = tpu.matmul %8, %9, %cst_10 {dimension_numbers = #tpu.dot_dimension_numbers<[1], [0], [0], [1], [0, 0, 1, 1], [], []>} : vector<1x4xf32>, vector<4x32xf32>, vector<1x32xf32> -> vector<1x32xf32>
    %c0_11 = arith.constant 0 : index
    %c0_12 = arith.constant 0 : index
    %11 = vector.load %arg4[%c0_11, %c0_12] : memref<32x4xf32, #tpu.memory_space<vmem>>, vector<32x4xf32>
    %cst_13 = arith.constant dense<0.000000e+00> : vector<1x4xf32>
    %12 = tpu.matmul %2, %11, %cst_13 {dimension_numbers = #tpu.dot_dimension_numbers<[1], [0], [0], [1], [0, 0, 1, 1], [], []>} : vector<1x32xf32>, vector<32x4xf32>, vector<1x4xf32> -> vector<1x4xf32>
    %cst_14 = arith.constant 0.000000e+00 : f32
    %13 = vector.broadcast %cst_14 : f32 to vector<1x4xf32>
    %14 = arith.maximumf %12, %13 : vector<1x4xf32>
    %c0_15 = arith.constant 0 : index
    %c0_16 = arith.constant 0 : index
    %15 = vector.load %arg5[%c0_15, %c0_16] : memref<4x32xf32, #tpu.memory_space<vmem>>, vector<4x32xf32>
    %cst_17 = arith.constant dense<0.000000e+00> : vector<1x32xf32>
    %16 = tpu.matmul %14, %15, %cst_17 {dimension_numbers = #tpu.dot_dimension_numbers<[1], [0], [0], [1], [0, 0, 1, 1], [], []>} : vector<1x4xf32>, vector<4x32xf32>, vector<1x32xf32> -> vector<1x32xf32>
    %cst_18 = arith.constant 5.000000e-01 : f32
    %17 = vector.broadcast %cst_18 : f32 to vector<1x32xf32>
    %18 = arith.mulf %17, %10 : vector<1x32xf32>
    %cst_19 = arith.constant 5.000000e-01 : f32
    %19 = vector.broadcast %cst_19 : f32 to vector<1x32xf32>
    %20 = arith.mulf %19, %16 : vector<1x32xf32>
    %21 = arith.addf %18, %20 : vector<1x32xf32>
    %22 = arith.negf %21 : vector<1x32xf32>
    %23 = math.exp %22 : vector<1x32xf32>
    %cst_20 = arith.constant 1.000000e+00 : f32
    %24 = vector.broadcast %cst_20 : f32 to vector<1x32xf32>
    %25 = arith.addf %24, %23 : vector<1x32xf32>
    %26 = arith.divf %24, %25 : vector<1x32xf32>
    %cst_21 = arith.constant 1.000000e+00 : f32
    %27 = vector.broadcast %cst_21 : f32 to vector<1x32xf32>
    %28 = arith.addf %26, %27 : vector<1x32xf32>
    %29 = vector.shape_cast %28 : vector<1x32xf32> to vector<1x32x1xf32>
    %30 = vector.broadcast %29 : vector<1x32x1xf32> to vector<1x32x256xf32>
    %31 = arith.mulf %0, %30 : vector<1x32x256xf32>
    %c0_22 = arith.constant 0 : index
    %c0_23 = arith.constant 0 : index
    %c0_24 = arith.constant 0 : index
    %32 = vector.load %arg6[%c0_22, %c0_23, %c0_24] : memref<1x32x256xf32, #tpu.memory_space<vmem>>, vector<1x32x256xf32>
    tpu.vector_store %arg6[%c0_22, %c0_23, %c0_24], %31 {strides = array<i32>} : memref<1x32x256xf32, #tpu.memory_space<vmem>>, vector<1x32x256xf32>,
    return
  }
  func.func @transform_0(%arg0: i32) -> (i32, i32, i32) {
    %c0_i32 = arith.constant 0 : i32
    %c0_i32_0 = arith.constant 0 : i32
    %c0_i32_1 = arith.constant 0 : i32
    return %arg0, %c0_i32, %c0_i32_0 : i32, i32, i32
  }
  func.func @transform_1(%arg0: i32) -> (i32, i32) {
    %c0_i32 = arith.constant 0 : i32
    %c0_i32_0 = arith.constant 0 : i32
    %c0_i32_1 = arith.constant 0 : i32
    return %c0_i32, %c0_i32_0 : i32, i32
  }
  func.func @transform_2(%arg0: i32) -> (i32, i32) {
    %c0_i32 = arith.constant 0 : i32
    %c0_i32_0 = arith.constant 0 : i32
    %c0_i32_1 = arith.constant 0 : i32
    return %c0_i32, %c0_i32_0 : i32, i32
  }
  func.func @transform_3(%arg0: i32) -> (i32, i32) {
    %c0_i32 = arith.constant 0 : i32
    %c0_i32_0 = arith.constant 0 : i32
    %c0_i32_1 = arith.constant 0 : i32
    return %c0_i32, %c0_i32_0 : i32, i32
  }
  func.func @transform_4(%arg0: i32) -> (i32, i32) {
    %c0_i32 = arith.constant 0 : i32
    %c0_i32_0 = arith.constant 0 : i32
    %c0_i32_1 = arith.constant 0 : i32
    return %c0_i32, %c0_i32_0 : i32, i32
  }
  func.func @transform_5(%arg0: i32) -> (i32, i32, i32) {
    %c0_i32 = arith.constant 0 : i32
    %c0_i32_0 = arith.constant 0 : i32
    %c0_i32_1 = arith.constant 0 : i32
    return %arg0, %c0_i32, %c0_i32_0 : i32, i32, i32
  }
}

</mosaic_0001>

<llo_original>
// kernel: tpu_custom_call.1
$region0: #{tpu_custom_call.1}
  #allocation0 [shape = 'u32[]', space=smem, size = 0x4, offset = 0x4, fixed_abs, tag = 'smem constant byte address 0x4 - core index']
  #allocation1 [shape = 'u32[72,128]{1,0:T(1,128)}', space=vmem, size = 0x9000, scoped, tag = 'internal scratch']
  %s0 = inlined_call_operand.hbm [shape: f32[2,32,256], index: 0, kind: input, shape index: {}]
  %s1 = inlined_call_operand.vmem [shape: f32[32,4], index: 1, kind: input, shape index: {}]
  %s2 = inlined_call_operand.vmem [shape: f32[4,32], index: 2, kind: input, shape index: {}]
  %s3 = inlined_call_operand.vmem [shape: f32[32,4], index: 3, kind: input, shape index: {}]
  %s4 = inlined_call_operand.vmem [shape: f32[4,32], index: 4, kind: input, shape index: {}]
  %s5 = inlined_call_operand.hbm [shape: f32[2,32,256], index: 5, kind: output, shape index: {}]
  %s6 = sld [smem:[#allocation0]]
  $region57: #{tpu_custom_call.1} parent=0
    _
  %s8 = ssub.s32 1, %s6
  %s9 = scalar_select 0, %s8, %s6
  $region1: #{tpu_custom_call.1} parent=0
    #allocation2 [shape = 'u8[65536]{0}', space=vmem, size = 0x10000, scoped, tag = 'input window, operand 0']
    #allocation3 [shape = 's32[2]{0}', space=sflag, size = 0x8, scoped, tag = 'scoped memory for tpu_custom_call.1']
    #allocation4 [shape = 's32[2]{0}', space=sflag, size = 0x8, scoped, tag = 'scoped memory for tpu_custom_call.1']
    #allocation5 [shape = 'u8[65536]{0}', space=vmem, size = 0x10000, scoped, tag = 'output window, operand 0']
    %10 = vsyncpa [#allocation3], 0
    %s11 = scalar_lea.sflag [#allocation3], 1
    %12 = vsyncpa %s11, 0
    %13 = vsyncpa [#allocation4], 0
    %s14 = scalar_lea.sflag [#allocation4], 1
    %15 = vsyncpa %s14, 0
    loop: start=0, step=1, limit=4
    $region2: #{tpu_custom_call.1} parent=1 // loop_pre_header
      _
    $region3: #{tpu_custom_call.1} parent=1 // loop_header
      %s17 = sphi 0, %s21
      %p18 = scmp.ge.s32.totalorder %s17, 4
      %s27 = sphi 0, %s29
      %s30 = sphi 0, %s27
      %s31 = sphi 0, %s30
      %s47 = sphi 0, %s31
      %s51 = sphi 0, %s51
      %s53 = sphi 0, %s51
      %s54 = sphi 0, %s53
      %s68 = sphi 0, %s54
      %s72 = sphi 0, %s72
      %s74 = sphi 0, %s72
      %s75 = sphi 0, %s74
      %s89 = sphi 0, %s75
      %s93 = sphi 0, %s93
      %s95 = sphi 0, %s93
      %s96 = sphi 0, %s95
      %s110 = sphi 0, %s96
      %s114 = sphi 0, %s114
      %s116 = sphi 0, %s114
      %s117 = sphi 0, %s116
      %s131 = sphi 0, %s117
      %s137 = sphi 0, %s139
      %s140 = sphi 0, %s137
      %s141 = sphi 0, %s140
      %s157 = sphi 0, %s141
    $region4: #{tpu_custom_call.1} parent=1 // loop_header_branch
      %20 = sbr.rel (%p18) target = $region8
    $region5: #{tpu_custom_call.1} parent=1 // loop_body
      %s22 = ssub.s32 %s17, 1
      %s23 = ssub.s32 %s17, 2
      %s24 = sadd.s32 %s17, 1
      %s25 = ssub.s32 %s17, %s24
      %p26 = scmp.eq.s32.totalorder %s25, 0
      %s28 = sadd.s32 %s27, 1
      %s29 = scalar_select %p26, %s27, %s28
      %p32 = pneg %p26
      %p33 = scmp.eq.s32.totalorder %s17, 1
      %p34 = por %p32, %p33
      %p35 = scmp.ne.s32.totalorder %s27, %s30
      %p36 = scmp.eq.s32.totalorder %s17, 0
      %p37 = por %p35, %p36
      %p38 = scmp.ne.s32.totalorder %s27, %s30
      %p39 = scmp.eq.s32.totalorder %s22, 1
      %p40 = por %p38, %p39
      %p41 = scmp.ne.s32.totalorder %s30, %s31
      %p42 = scmp.eq.s32.totalorder %s22, 0
      %p43 = por %p41, %p42
      %p44 = scmp.ne.s32.totalorder %s30, %s31
      %p45 = scmp.eq.s32.totalorder %s23, 1
      %p46 = por %p44, %p45
      %p48 = scmp.ne.s32.totalorder %s31, %s47
      %p49 = scmp.eq.s32.totalorder %s23, 0
      %p50 = por %p48, %p49
      %s52 = sadd.s32 %s51, 1
      %p55 = scmp.eq.s32.totalorder %s17, 1
      %p56 = scmp.ne.s32.totalorder %s51, %s53
      %p57 = scmp.eq.s32.totalorder %s17, 0
      %p58 = por %p56, %p57
      %p59 = scmp.ne.s32.totalorder %s51, %s53
      %p60 = scmp.eq.s32.totalorder %s22, 1
      %p61 = por %p59, %p60
      %p62 = scmp.ne.s32.totalorder %s53, %s54
      %p63 = scmp.eq.s32.totalorder %s22, 0
      %p64 = por %p62, %p63
      %p65 = scmp.ne.s32.totalorder %s53, %s54
      %p66 = scmp.eq.s32.totalorder %s23, 1
      %p67 = por %p65, %p66
      %p69 = scmp.ne.s32.totalorder %s54, %s68
      %p70 = scmp.eq.s32.totalorder %s23, 0
      %p71 = por %p69, %p70
      %s73 = sadd.s32 %s72, 1
      %p76 = scmp.eq.s32.totalorder %s17, 1
      %p77 = scmp.ne.s32.totalorder %s72, %s74
      %p78 = scmp.eq.s32.totalorder %s17, 0
      %p79 = por %p77, %p78
      %p80 = scmp.ne.s32.totalorder %s72, %s74
      %p81 = scmp.eq.s32.totalorder %s22, 1
      %p82 = por %p80, %p81
      %p83 = scmp.ne.s32.totalorder %s74, %s75
      %p84 = scmp.eq.s32.totalorder %s22, 0
      %p85 = por %p83, %p84
      %p86 = scmp.ne.s32.totalorder %s74, %s75
      %p87 = scmp.eq.s32.totalorder %s23, 1
      %p88 = por %p86, %p87
      %p90 = scmp.ne.s32.totalorder %s75, %s89
      %p91 = scmp.eq.s32.totalorder %s23, 0
      %p92 = por %p90, %p91
      %s94 = sadd.s32 %s93, 1
      %p97 = scmp.eq.s32.totalorder %s17, 1
      %p98 = scmp.ne.s32.totalorder %s93, %s95
      %p99 = scmp.eq.s32.totalorder %s17, 0
      %p100 = por %p98, %p99
      %p101 = scmp.ne.s32.totalorder %s93, %s95
      %p102 = scmp.eq.s32.totalorder %s22, 1
      %p103 = por %p101, %p102
      %p104 = scmp.ne.s32.totalorder %s95, %s96
      %p105 = scmp.eq.s32.totalorder %s22, 0
      %p106 = por %p104, %p105
      %p107 = scmp.ne.s32.totalorder %s95, %s96
      %p108 = scmp.eq.s32.totalorder %s23, 1
      %p109 = por %p107, %p108
      %p111 = scmp.ne.s32.totalorder %s96, %s110
      %p112 = scmp.eq.s32.totalorder %s23, 0
      %p113 = por %p111, %p112
      %s115 = sadd.s32 %s114, 1
      %p118 = scmp.eq.s32.totalorder %s17, 1
      %p119 = scmp.ne.s32.totalorder %s114, %s116
      %p120 = scmp.eq.s32.totalorder %s17, 0
      %p121 = por %p119, %p120
      %p122 = scmp.ne.s32.totalorder %s114, %s116
      %p123 = scmp.eq.s32.totalorder %s22, 1
      %p124 = por %p122, %p123
      %p125 = scmp.ne.s32.totalorder %s116, %s117
      %p126 = scmp.eq.s32.totalorder %s22, 0
      %p127 = por %p125, %p126
      %p128 = scmp.ne.s32.totalorder %s116, %s117
      %p129 = scmp.eq.s32.totalorder %s23, 1
      %p130 = por %p128, %p129
      %p132 = scmp.ne.s32.totalorder %s117, %s131
      %p133 = scmp.eq.s32.totalorder %s23, 0
      %p134 = por %p132, %p133
      %s135 = ssub.s32 %s17, %s24
      %p136 = scmp.eq.s32.totalorder %s135, 0
      %s138 = sadd.s32 %s137, 1
      %s139 = scalar_select %p136, %s137, %s138
      %p142 = pneg %p136
      %p143 = scmp.eq.s32.totalorder %s17, 1
      %p144 = por %p142, %p143
      %p145 = scmp.ne.s32.totalorder %s137, %s140
      %p146 = scmp.eq.s32.totalorder %s17, 0
      %p147 = por %p145, %p146
      %p148 = scmp.ne.s32.totalorder %s137, %s140
      %p149 = scmp.eq.s32.totalorder %s22, 1
      %p150 = por %p148, %p149
      %p151 = scmp.ne.s32.totalorder %s140, %s141
      %p152 = scmp.eq.s32.totalorder %s22, 0
      %p153 = por %p151, %p152
      %p154 = scmp.ne.s32.totalorder %s140, %s141
      %p155 = scmp.eq.s32.totalorder %s23, 1
      %p156 = por %p154, %p155
      %p158 = scmp.ne.s32.totalorder %s141, %s157
      %p159 = scmp.eq.s32.totalorder %s23, 0
      %p160 = por %p158, %p159
      %p161 = scmp.le.s32.totalorder 1, %s17
      %p162 = scmp.lt.s32.totalorder %s17, 3
      %p163 = pnand %p161, %p162
      %p164 = pneg %p163
      // Predicated region
      $region9: #{tpu_custom_call.1} parent=5 // pred_check
        _
      $region10: #{tpu_custom_call.1} parent=5 // pred_check_branch
        %166 = sbr.rel (%p163) target = $region12
      $region11: #{tpu_custom_call.1} parent=5 // pred_region
        %s167 = ssub.s32 %s17, 1
        // Predicated region
        $region13: #{tpu_custom_call.1} parent=11 // pred_check
          %p168 = pneg %p64
        $region14: #{tpu_custom_call.1} parent=11 // pred_check_branch
          %170 = sbr.rel (%p168) target = $region16
        $region15: #{tpu_custom_call.1} parent=11 // pred_region
          _
        $region16: #{tpu_custom_call.1} parent=11 // pred_fallthru
          _
        // Predicated region
        $region17: #{tpu_custom_call.1} parent=11 // pred_check
          %p171 = pneg %p85
        $region18: #{tpu_custom_call.1} parent=11 // pred_check_branch
          %173 = sbr.rel (%p171) target = $region20
        $region19: #{tpu_custom_call.1} parent=11 // pred_region
          _
        $region20: #{tpu_custom_call.1} parent=11 // pred_fallthru
          _
        // Predicated region
        $region21: #{tpu_custom_call.1} parent=11 // pred_check
          %p174 = pneg %p106
        $region22: #{tpu_custom_call.1} parent=11 // pred_check_branch
          %176 = sbr.rel (%p174) target = $region24
        $region23: #{tpu_custom_call.1} parent=11 // pred_region
          _
        $region24: #{tpu_custom_call.1} parent=11 // pred_fallthru
          _
        // Predicated region
        $region25: #{tpu_custom_call.1} parent=11 // pred_check
          %p177 = pneg %p127
        $region26: #{tpu_custom_call.1} parent=11 // pred_check_branch
          %179 = sbr.rel (%p177) target = $region28
        $region27: #{tpu_custom_call.1} parent=11 // pred_region
          _
        $region28: #{tpu_custom_call.1} parent=11 // pred_fallthru
          _
      $region12: #{tpu_custom_call.1} parent=5 // pred_fallthru
        _
      %p180 = scmp.lt.s32.totalorder %s17, 2
      // Predicated region
      $region29: #{tpu_custom_call.1} parent=5 // pred_check
        %p181 = pneg %p180
      $region30: #{tpu_custom_call.1} parent=5 // pred_check_branch
        %183 = sbr.rel (%p181) target = $region32
      $region31: #{tpu_custom_call.1} parent=5 // pred_region
        // Predicated region
        $region33: #{tpu_custom_call.1} parent=31 // pred_check
          %p184 = pneg %p37
        $region34: #{tpu_custom_call.1} parent=31 // pred_check_branch
          %186 = sbr.rel (%p184) target = $region36
        $region35: #{tpu_custom_call.1} parent=31 // pred_region
          %s187 = sand.u32 %s27, 1
          %s188 = scalar_lea.sflag [#allocation3], %s187
          %s189 = sand.u32 %s27, 1
          %s190 = smul.addr %s189, 64
          %s191 = scalar_lea.vmem [#allocation2], %s190
          %193 = vsyncadd %s188, 0
          %s194 = smul.addr %s17, 8
          %s195 = smul.addr %s194, 8
          %s196 = scalar_lea.hbm %s0, %s195
          %s197 = sshll.u32 %s196, 4
          %s198 = int_to_ptr.hbm [resolvable:$true] %s197
          %s199 = sshll.u32 %s191, 4
          %s200 = int_to_ptr.vmem [resolvable:$true] %s199
          %205 = dma.hbm_to_vmem [thread:$0]  %s198, 1024, %s200, %s188, 256, 256, 16
        $region36: #{tpu_custom_call.1} parent=31 // pred_fallthru
          _
      $region32: #{tpu_custom_call.1} parent=5 // pred_fallthru
        _
      %p206 = scmp.le.s32.totalorder 1, %s17
      %p207 = scmp.lt.s32.totalorder %s17, 3
      %p208 = pnand %p206, %p207
      %p209 = pneg %p208
      // Predicated region
      $region37: #{tpu_custom_call.1} parent=5 // pred_check
        _
      $region38: #{tpu_custom_call.1} parent=5 // pred_check_branch
        %211 = sbr.rel (%p208) target = $region40
      $region39: #{tpu_custom_call.1} parent=5 // pred_region
        %s212 = ssub.s32 %s17, 1
        %s213 = sand.u32 %s30, 1
        %s214 = scalar_lea.sflag [#allocation3], %s213
        %s215 = sand.u32 %s30, 1
        %s216 = smul.addr %s215, 64
        %s217 = scalar_lea.vmem [#allocation2], %s216
        // Predicated region
        $region41: #{tpu_custom_call.1} parent=39 // pred_check
          %p218 = pneg %p43
        $region42: #{tpu_custom_call.1} parent=39 // pred_check_branch
          %220 = sbr.rel (%p218) target = $region44
        $region43: #{tpu_custom_call.1} parent=39 // pred_region
          %222 = dma.done %s214, 1024
        $region44: #{tpu_custom_call.1} parent=39 // pred_fallthru
          _
        %s223 = sand.u32 %s30, 1
        %s224 = scalar_lea.sflag [#allocation3], %s223
        %s225 = sand.u32 %s30, 1
        %s226 = smul.addr %s225, 64
        %s227 = scalar_lea.vmem [#allocation2], %s226
        %p228 = pneg %p43
        %p229 = pneg %p40
        %p230 = pneg %p64
        %p231 = pneg %p61
        %p232 = pneg %p85
        %p233 = pneg %p82
        %p234 = pneg %p106
        %p235 = pneg %p103
        %p236 = pneg %p127
        %p237 = pneg %p124
        %p238 = pneg %p153
        %p239 = pneg %p150
        %s240 = sand.u32 %s140, 1
        %s241 = scalar_lea.sflag [#allocation4], %s240
        %s242 = sand.u32 %s140, 1
        %s243 = smul.addr %s242, 64
        %s244 = scalar_lea.vmem [#allocation5], %s243
        %v245 = vld [vmem:[%s217] sm:$0xff]
        %v246 = vld [vmem:[%s217 + $0x8] sm:$0xff]
        %v247 = vld [vmem:[%s217 + $0x10] sm:$0xff]
        %v248 = vld [vmem:[%s217 + $0x18] sm:$0xff]
        %v249 = vld [vmem:[%s217 + $0x20] sm:$0xff]
        %v250 = vld [vmem:[%s217 + $0x28] sm:$0xff]
        %v251 = vld [vmem:[%s217 + $0x30] sm:$0xff]
        %v252 = vld [vmem:[%s217 + $0x38] sm:$0xff]
        %v253 = vadd.f32 %v245, %v246
        %254 = vadd.xlane.f32.xlu0 %v253
        %v255 = vpop.xlane.xlu0 %254
        %v256 = vadd.f32 %v247, %v248
        %257 = vadd.xlane.f32.xlu0 %v256
        %v258 = vpop.xlane.xlu0 %257
        %v259 = vadd.f32 %v249, %v250
        %260 = vadd.xlane.f32.xlu0 %v259
        %v261 = vpop.xlane.xlu0 %260
        %v262 = vadd.f32 %v251, %v252
        %263 = vadd.xlane.f32.xlu0 %v262
        %v264 = vpop.xlane.xlu0 %263
        %v265 = vmax.f32 %v245, %v246
        %266 = vmax.xlane.f32.xlu0 %v265
        %v267 = vpop.xlane.xlu0 %266
        %v268 = vmax.f32 %v247, %v248
        %269 = vmax.xlane.f32.xlu0 %v268
        %v270 = vpop.xlane.xlu0 %269
        %v271 = vmax.f32 %v249, %v250
        %272 = vmax.xlane.f32.xlu0 %v271
        %v273 = vpop.xlane.xlu0 %272
        %v274 = vmax.f32 %v251, %v252
        %275 = vmax.xlane.f32.xlu0 %v274
        %v276 = vpop.xlane.xlu0 %275
        %v277 = vmul.f32 %v255, 0.00390625
        %v278 = vmul.f32 %v258, 0.00390625
        %v279 = vmul.f32 %v261, 0.00390625
        %v280 = vmul.f32 %v264, 0.00390625
        %v281 = vld [vmem:[%s1] sm:$0xff]
        %v282 = vld [vmem:[%s1 + $0x8] sm:$0xff]
        %v283 = vld [vmem:[%s1 + $0x10] sm:$0xff]
        %v284 = vld [vmem:[%s1 + $0x18] sm:$0xff]
        %v289 = vlaneseq
        %v290 = vand.u32 %v289, 127
        %v291 = vperm.slane %v277, %v290
        %v292 = vadd.s32 %v290, 4294967288
        %v293 = vperm.slane %v278, %v292
        %vm294 = vcmask 130112
        %v295 = vsel %vm294, %v293, %v291
        %v296 = vadd.s32 %v290, 4294967280
        %v297 = vperm.slane %v279, %v296
        %vm298 = vcmask 195712
        %v299 = vsel %vm298, %v297, %v295
        %v300 = vadd.s32 %v290, 4294967272
        %v301 = vperm.slane %v280, %v300
        %vm302 = vcmask 261312
        %v303 = vsel %vm302, %v301, %v299
        %vm304 = vcmask 261120
        %v305 = vsel %vm304, %v303, 0
        %307 = vmatpush.msra.mxu0 0.0
        %308 = vmatpush.msra.mxu0 0.0
        %309 = vmatpush.msra.mxu0 0.0
        %310 = vmatpush.msra.mxu0 0.0
        %311 = vmatpush.msra.mxu0 0.0
        %312 = vmatpush.msra.mxu0 0.0
        %313 = vmatpush.msra.mxu0 0.0
        %314 = vmatpush.msra.mxu0 0.0
        %315 = vmatpush.msra.mxu0 0.0
        %316 = vmatpush.msra.mxu0 0.0
        %317 = vmatpush.msra.mxu0 0.0
        %318 = vmatpush.msra.mxu0 0.0
        %319 = vmatpush.msra.mxu0 %v284
        %320 = vmatpush.msra.mxu0 %v283
        %321 = vmatpush.msra.mxu0 %v282
        %322 = vmatpush.msra.mxu0 %v281
        %323 = vmatmul.f32.gmra.mxu0 %v305
        %v324 = vpop.f32.mrf.mxu0
        %v325 = vadd.f32 0.0, %v324
        %326 = vdwg.mxu0
        %v327 = vmax.f32 %v325, 0.0
        %v328 = vld [vmem:[%s2] sm:$0xf]
        %vm329 = vcmask 31744
        %v331 = vsel %vm329, %v327, 0
        %vm333 = vcmask 1043456
        %v335 = vsel %vm333, %v328, 0
        %337 = vmatpush.msra.mxu0 0.0
        %338 = vmatpush.msra.mxu0 0.0
        %339 = vmatpush.msra.mxu0 0.0
        %340 = vmatpush.msra.mxu0 0.0
        %341 = vmatpush.msra.mxu0 0.0
        %342 = vmatpush.msra.mxu0 0.0
        %343 = vmatpush.msra.mxu0 0.0
        %344 = vmatpush.msra.mxu0 0.0
        %345 = vmatpush.msra.mxu0 0.0
        %346 = vmatpush.msra.mxu0 0.0
        %347 = vmatpush.msra.mxu0 0.0
        %348 = vmatpush.msra.mxu0 0.0
        %349 = vmatpush.msra.mxu0 0.0
        %350 = vmatpush.msra.mxu0 0.0
        %351 = vmatpush.msra.mxu0 0.0
        %352 = vmatpush.msra.mxu0 %v335
        %353 = vmatmul.f32.gmra.mxu0 %v331
        %v354 = vpop.f32.mrf.mxu0
        %v355 = vadd.f32 0.0, %v354
        %356 = vdwg.mxu0
        %v357 = vld [vmem:[%s3] sm:$0xff]
        %v358 = vld [vmem:[%s3 + $0x8] sm:$0xff]
        %v359 = vld [vmem:[%s3 + $0x10] sm:$0xff]
        %v360 = vld [vmem:[%s3 + $0x18] sm:$0xff]
        %v365 = vperm.slane %v267, %v290
        %v366 = vperm.slane %v270, %v292
        %v367 = vsel %vm294, %v366, %v365
        %v368 = vperm.slane %v273, %v296
        %v369 = vsel %vm298, %v368, %v367
        %v370 = vperm.slane %v276, %v300
        %v371 = vsel %vm302, %v370, %v369
        %v372 = vsel %vm304, %v371, 0
        %374 = vmatpush.msra.mxu0 0.0
        %375 = vmatpush.msra.mxu0 0.0
        %376 = vmatpush.msra.mxu0 0.0
        %377 = vmatpush.msra.mxu0 0.0
        %378 = vmatpush.msra.mxu0 0.0
        %379 = vmatpush.msra.mxu0 0.0
        %380 = vmatpush.msra.mxu0 0.0
        %381 = vmatpush.msra.mxu0 0.0
        %382 = vmatpush.msra.mxu0 0.0
        %383 = vmatpush.msra.mxu0 0.0
        %384 = vmatpush.msra.mxu0 0.0
        %385 = vmatpush.msra.mxu0 0.0
        %386 = vmatpush.msra.mxu0 %v360
        %387 = vmatpush.msra.mxu0 %v359
        %388 = vmatpush.msra.mxu0 %v358
        %389 = vmatpush.msra.mxu0 %v357
        %390 = vmatmul.f32.gmra.mxu0 %v372
        %v391 = vpop.f32.mrf.mxu0
        %v392 = vadd.f32 0.0, %v391
        %393 = vdwg.mxu0
        %v394 = vmax.f32 %v392, 0.0
        %v395 = vld [vmem:[%s4] sm:$0xf]
        %v397 = vsel %vm329, %v394, 0
        %v400 = vsel %vm333, %v395, 0
        %402 = vmatpush.msra.mxu0 0.0
        %403 = vmatpush.msra.mxu0 0.0
        %404 = vmatpush.msra.mxu0 0.0
        %405 = vmatpush.msra.mxu0 0.0
        %406 = vmatpush.msra.mxu0 0.0
        %407 = vmatpush.msra.mxu0 0.0
        %408 = vmatpush.msra.mxu0 0.0
        %409 = vmatpush.msra.mxu0 0.0
        %410 = vmatpush.msra.mxu0 0.0
        %411 = vmatpush.msra.mxu0 0.0
        %412 = vmatpush.msra.mxu0 0.0
        %413 = vmatpush.msra.mxu0 0.0
        %414 = vmatpush.msra.mxu0 0.0
        %415 = vmatpush.msra.mxu0 0.0
        %416 = vmatpush.msra.mxu0 0.0
        %417 = vmatpush.msra.mxu0 %v400
        %418 = vmatmul.f32.gmra.mxu0 %v397
        %v419 = vpop.f32.mrf.mxu0
        %v420 = vadd.f32 0.0, %v419
        %421 = vdwg.mxu0
        %v422 = vmul.f32 %v355, 0.5
        %v423 = vmul.f32 %v420, 0.5
        %v424 = vadd.f32 %v422, %v423
        %v425 = vxor.u32 %v424, 2147483648
        %v426 = vmul.f32 %v425, 1.442695
        %v427 = vpow.pop %v426
        %v428 = vadd.f32 %v427, 1.0
        %v429 = vrcp.pop %v428
        %v430 = vmul.f32 %v428, %v429
        %v431 = vsub.f32 1.0, %v430
        %v432 = vmul.f32 %v429, %v431
        %v433 = vadd.f32 %v429, %v432
        %vm434 = vweird.f32 %v428
        %vm435 = vweird.f32 %v429
        %vm436 = vmor %vm434, %vm435
        %v437 = vsel %vm436, %v429, %v433
        %v438 = vand.u32 2147483647, %v428
        %vm439 = vcmp.eq.f32.partialorder %v438, 8.507059e+37
        %v440 = vand.u32 %v428, 2147483648
        %v441 = vor.u32 1.1754944e-38, %v440
        %v442 = vsel %vm439, %v441, %v437
        %v443 = vmul.f32 1.0, %v442
        %v444 = vadd.f32 %v443, 1.0
        %v445 = vperm.slane %v444, 0
        %v446 = vlaneseq
        %v447 = vshrl.u32 %v446, 7
        %449 = vset.pattern.permute.xlu0 %v447
        %450 = vperm.xlu0 %449, %v445
        %v451 = vpop.permute.xlu0 %450
        %v452 = vlaneseq
        %v453 = vshrl.u32 %v452, 7
        %v454 = vadd.s32 %v453, 8
        %455 = vset.pattern.permute.xlu0 %v454
        %456 = vperm.xlu0 %455, %v445
        %v457 = vpop.permute.xlu0 %456
        %v458 = vlaneseq
        %v459 = vshrl.u32 %v458, 7
        %v460 = vadd.s32 %v459, 16
        %461 = vset.pattern.permute.xlu0 %v460
        %462 = vperm.xlu0 %461, %v445
        %v463 = vpop.permute.xlu0 %462
        %v464 = vlaneseq
        %v465 = vshrl.u32 %v464, 7
        %v466 = vadd.s32 %v465, 24
        %467 = vset.pattern.permute.xlu0 %v466
        %468 = vperm.xlu0 %467, %v445
        %v469 = vpop.permute.xlu0 %468
        %v470 = vmul.f32 %v245, %v451
        %v471 = vmul.f32 %v246, %v451
        %v472 = vmul.f32 %v247, %v457
        %v473 = vmul.f32 %v248, %v457
        %v474 = vmul.f32 %v249, %v463
        %v475 = vmul.f32 %v250, %v463
        %v476 = vmul.f32 %v251, %v469
        %v477 = vmul.f32 %v252, %v469
        %478 = vst [vmem:[%s244] sm:$0xff] %v470
        %479 = vst [vmem:[%s244 + $0x8] sm:$0xff] %v471
        %480 = vst [vmem:[%s244 + $0x10] sm:$0xff] %v472
        %481 = vst [vmem:[%s244 + $0x18] sm:$0xff] %v473
        %482 = vst [vmem:[%s244 + $0x20] sm:$0xff] %v474
        %483 = vst [vmem:[%s244 + $0x28] sm:$0xff] %v475
        %484 = vst [vmem:[%s244 + $0x30] sm:$0xff] %v476
        %485 = vst [vmem:[%s244 + $0x38] sm:$0xff] %v477
        %s486 = sand.u32 %s140, 1
        %s487 = scalar_lea.sflag [#allocation4], %s486
        %s488 = sand.u32 %s140, 1
        %s489 = smul.addr %s488, 64
        %s490 = scalar_lea.vmem [#allocation5], %s489
        // Predicated region
        $region45: #{tpu_custom_call.1} parent=39 // pred_check
          %p491 = pneg %p150
        $region46: #{tpu_custom_call.1} parent=39 // pred_check_branch
          %493 = sbr.rel (%p491) target = $region48
        $region47: #{tpu_custom_call.1} parent=39 // pred_region
          %495 = vsyncadd %s487, 0
          %s496 = smul.addr %s22, 8
          %s497 = smul.addr %s496, 8
          %s498 = scalar_lea.hbm %s5, %s497
          %s499 = sshll.u32 %s490, 4
          %s500 = int_to_ptr.vmem [resolvable:$true] %s499
          %s501 = sshll.u32 %s498, 4
          %s502 = int_to_ptr.hbm [resolvable:$true] %s501
          %507 = dma.vmem_to_hbm [thread:$0]  %s500, 1024, %s502, %s487, 256, 256, 16
        $region48: #{tpu_custom_call.1} parent=39 // pred_fallthru
          _
      $region40: #{tpu_custom_call.1} parent=5 // pred_fallthru
        _
      %p508 = scmp.le.s32.totalorder 2, %s17
      // Predicated region
      $region49: #{tpu_custom_call.1} parent=5 // pred_check
        %p509 = pneg %p508
      $region50: #{tpu_custom_call.1} parent=5 // pred_check_branch
        %511 = sbr.rel (%p509) target = $region52
      $region51: #{tpu_custom_call.1} parent=5 // pred_region
        %s512 = ssub.s32 %s17, 2
        // Predicated region
        $region53: #{tpu_custom_call.1} parent=51 // pred_check
          %p513 = pneg %p156
        $region54: #{tpu_custom_call.1} parent=51 // pred_check_branch
          %515 = sbr.rel (%p513) target = $region56
        $region55: #{tpu_custom_call.1} parent=51 // pred_region
          %s516 = sand.u32 %s141, 1
          %s517 = scalar_lea.sflag [#allocation4], %s516
          %s518 = sand.u32 %s141, 1
          %s519 = smul.addr %s518, 64
          %s520 = scalar_lea.vmem [#allocation5], %s519
          %522 = dma.done %s517, 1024
        $region56: #{tpu_custom_call.1} parent=51 // pred_fallthru
          _
      $region52: #{tpu_custom_call.1} parent=5 // pred_fallthru
        _
    $region6: #{tpu_custom_call.1} parent=1 // loop_footer
      %s21 = sadd.s32 1, %s17
    $region7: #{tpu_custom_call.1} parent=1 // loop_footer_branch
      %16 = sbr.rel target = $region3
    $region8: #{tpu_custom_call.1} parent=1 // loop_exit
      _
    %523 = vsyncpa [#allocation3], 1
    %s524 = scalar_lea.sflag [#allocation3], 1
    %525 = vsyncpa %s524, 1
    %526 = vsyncpa [#allocation4], 1
    %s527 = scalar_lea.sflag [#allocation4], 1
    %528 = vsyncpa %s527, 1

</llo_original>
